<compile_context>
chip_gen: v7x
topology: tpu7x:2x2x1
jax: 0.10.0
libtpu: 0.0.40
codegen_flags: <defaults>
</compile_context>

<pallas_src>
import math

import jax
import jax.numpy as jnp
import numpy as np
from jax.experimental import pallas as pl
from jax.experimental.pallas import tpu as pltpu

_IMAGENET_MEAN = (0.485, 0.456, 0.406)
_IMAGENET_STD = (0.229, 0.224, 0.225)

_VMEM_BUDGET_BYTES = 10 * 1024 * 1024   # double-buffered working-set budget


def _set_prob(epoch, max_epoch):
    """PatchMask.set_prob: alpha == percent == cosine schedule value."""
    if epoch is None:
        return 0.3, 0.3
    v = 0.5 * (1.0 - math.cos(0.5 * math.pi / max_epoch * epoch))
    return v, v


def _make_patch_mask(key, batch, height, width, patch_size, percent):
    """(torch.rand((B,1,patch_num)) < percent) followed by F.fold(kernel=stride=P).

    Returns the 0/1 mask as (B, 1, H, W) float32 (identical across channels in
    the PyTorch module, so a single channel suffices).
    """
    hp, wp = height // patch_size, width // patch_size
    u = jax.random.uniform(key, (batch, hp * wp), jnp.float32)
    mask_id = (u < percent).astype(jnp.float32).reshape(batch, hp, wp)
    m = jnp.repeat(jnp.repeat(mask_id, patch_size, axis=1), patch_size, axis=2)
    return m[:, None, :, :]  # (B, 1, H, W)


def _build_kernel(tb, channels, scales, biases):
    """Kernel closure over the batch tile, channel count and Normalize consts."""

    def kernel(aug_ref,   # (TB, C, R, L) augment images at batch block b
               img_ref,   # (TB, C, R, L) clean images at batch block nb-1-b
               am_ref,    # (TB, 1, R, L) alpha*mask at batch block nb-1-b
               out_ref):  # (TB, C, R, L)
        # TODO(synk): RandomResizedCrop / ColorJitter / GaussianBlur /
        # RandomHorizontalFlip are stochastic torchvision augmentations with no
        # clean Pallas equivalent; only Normalize is reproduced in-kernel.
        for t in range(tb):
            tf = tb - 1 - t                     # within-block batch flip
            am_t = am_ref[tf, 0]                # (R, L) f32, values 0 or alpha
            for c in range(channels):
                aug_n = aug_ref[t, c].astype(jnp.float32) * scales[c] + biases[c]
                img_c = img_ref[tf, c].astype(jnp.float32)
                out_ref[t, c] = (aug_n + am_t * (img_c - aug_n)).astype(out_ref.dtype)

    return kernel


def patch_mask_forward(images, augment_images, *, epoch, max_epoch,
                       patch_size, key):
    B, C, H, W = images.shape
    assert C == len(_IMAGENET_MEAN), "Normalize constants assume 3 channels"
    alpha, percent = _set_prob(epoch, max_epoch)

    # Compact, alpha-folded patch mask (values are 0 or alpha), float32.
    mask01 = _make_patch_mask(key, B, H, W, patch_size, percent)   # (B,1,H,W)
    am = (alpha * mask01).astype(jnp.float32)

    # Lane-dense flat layout for the spatial dims.
    HW = H * W
    lane = next((l for l in (1024, 512, 256, 128) if HW % l == 0), None)
    if lane is None:
        R, L = H, W                    # fallback: keep (H, W) as last two dims
    else:
        R, L = HW // lane, lane

    aug_flat = augment_images.reshape(B, C, R, L)
    img_flat = images.reshape(B, C, R, L)
    am_flat = am.reshape(B, 1, R, L)

    # Batch tile TB: biggest divisor of B whose double-buffered working set
    # (3 input streams + 1 output stream) fits the VMEM budget.
    bytes_per_image = (augment_images.dtype.itemsize * C     # aug in
                       + images.dtype.itemsize * C           # img in
                       + images.dtype.itemsize * C           # out
                       + 4) * R * L                          # f32 mask
    TB = 1
    for cand in range(B, 0, -1):
        if B % cand == 0 and 2 * cand * bytes_per_image <= _VMEM_BUDGET_BYTES:
            TB = cand
            break
    nb = B // TB

    # Normalize folded to scale/bias, baked as Python-float scalars.
    scales = tuple(1.0 / s for s in _IMAGENET_STD)
    biases = tuple(-m / s for m, s in zip(_IMAGENET_MEAN, _IMAGENET_STD))
    kernel = _build_kernel(TB, C, scales, biases)

    def same_map(b):                   # augment_images / output
        return (b, 0, 0, 0)

    def flip_map(b):                   # torch.flip(dims=[0]) folded into indexing
        return (nb - 1 - b, 0, 0, 0)

    out_flat = pl.pallas_call(
        kernel,
        out_shape=jax.ShapeDtypeStruct((B, C, R, L), images.dtype),
        grid=(nb,),
        in_specs=[
            pl.BlockSpec((TB, C, R, L), same_map),   # augment_images
            pl.BlockSpec((TB, C, R, L), flip_map),   # images (batch-flipped view)
            pl.BlockSpec((TB, 1, R, L), flip_map),   # alpha*mask (batch-flipped view)
        ],
        out_specs=pl.BlockSpec((TB, C, R, L), same_map),
        compiler_params=pltpu.CompilerParams(
            dimension_semantics=("parallel",)),
    )(aug_flat, img_flat, am_flat)

    return out_flat.reshape(B, C, H, W)


def patch_mask_reference(images, augment_images, *, epoch, max_epoch,
                         patch_size, key):
    """Pure-JAX reference mirroring the PyTorch forward (same mask / alpha)."""
    B, C, H, W = images.shape
    alpha, percent = _set_prob(epoch, max_epoch)
    mask01 = _make_patch_mask(key, B, H, W, patch_size, percent)
    mean = jnp.asarray(_IMAGENET_MEAN, jnp.float32).reshape(1, C, 1, 1)
    std = jnp.asarray(_IMAGENET_STD, jnp.float32).reshape(1, C, 1, 1)
    aug = (augment_images.astype(jnp.float32) - mean) / std
    aug = jnp.flip(aug, axis=0)
    aug = aug + alpha * mask01 * (images.astype(jnp.float32) - aug)
    aug = jnp.flip(aug, axis=0)
    return aug.astype(images.dtype)


if __name__ == "__main__":
    key = jax.random.PRNGKey(0)
    k_img, k_aug, k_mask = jax.random.split(key, 3)

    B, C, IMG, PATCH = 2, 3, 16, 4     # patch_num = (16 // 4) ** 2 = 16
    EPOCH, MAX_EPOCH = 3, 10

    images = jax.random.normal(k_img, (B, C, IMG, IMG), jnp.float32)
    augment_images = jax.random.normal(k_aug, (B, C, IMG, IMG), jnp.float32)

    out = patch_mask_forward(images, augment_images, epoch=EPOCH,
                             max_epoch=MAX_EPOCH, patch_size=PATCH, key=k_mask)
    out = jax.block_until_ready(out)

    ref = patch_mask_reference(images, augment_images, epoch=EPOCH,
                               max_epoch=MAX_EPOCH, patch_size=PATCH, key=k_mask)
    np.testing.assert_allclose(np.asarray(out), np.asarray(ref),
                               rtol=1e-5, atol=1e-5)
    print("KERNEL_OK")
</pallas_src>

<mosaic_0001>
module attributes {stable_mosaic.version = 11 : i64} {
  func.func @kernel(%arg0: i32, %arg1: memref<2x3x1x256xf32, #tpu.memory_space<vmem>>, %arg2: memref<2x3x1x256xf32, #tpu.memory_space<vmem>>, %arg3: memref<2x1x1x256xf32, #tpu.memory_space<vmem>>, %arg4: memref<2x3x1x256xf32, #tpu.memory_space<vmem>>) attributes {dimension_semantics = [#tpu.dimension_semantics<parallel>], iteration_bounds = array<i64: 1>, scalar_prefetch = 0 : i64, scratch_operands = 0 : i64, tpu.core_type = #tpu.core_type<tc>, window_params = [{transform_indices = @transform_0, window_bounds = array<i64: 2, 3, 1, 256>}, {transform_indices = @transform_1, window_bounds = array<i64: 2, 3, 1, 256>}, {transform_indices = @transform_2, window_bounds = array<i64: 2, 1, 1, 256>}, {transform_indices = @transform_3, window_bounds = array<i64: 2, 3, 1, 256>}]} {
    %c1 = arith.constant 1 : index
    %c0 = arith.constant 0 : index
    %c0_0 = arith.constant 0 : index
    %c0_1 = arith.constant 0 : index
    %0 = vector.load %arg3[%c1, %c0, %c0_0, %c0_1] : memref<2x1x1x256xf32, #tpu.memory_space<vmem>>, vector<1x1x1x256xf32>
    %1 = vector.shape_cast %0 : vector<1x1x1x256xf32> to vector<1x256xf32>
    %c0_2 = arith.constant 0 : index
    %c0_3 = arith.constant 0 : index
    %c0_4 = arith.constant 0 : index
    %c0_5 = arith.constant 0 : index
    %2 = vector.load %arg1[%c0_2, %c0_3, %c0_4, %c0_5] : memref<2x3x1x256xf32, #tpu.memory_space<vmem>>, vector<1x1x1x256xf32>
    %3 = vector.shape_cast %2 : vector<1x1x1x256xf32> to vector<1x256xf32>
    %cst = arith.constant 4.36681223 : f32
    %4 = vector.broadcast %cst : f32 to vector<1x256xf32>
    %5 = arith.mulf %3, %4 : vector<1x256xf32>
    %cst_6 = arith.constant -2.11790395 : f32
    %6 = vector.broadcast %cst_6 : f32 to vector<1x256xf32>
    %7 = arith.addf %5, %6 : vector<1x256xf32>
    %c1_7 = arith.constant 1 : index
    %c0_8 = arith.constant 0 : index
    %c0_9 = arith.constant 0 : index
    %c0_10 = arith.constant 0 : index
    %8 = vector.load %arg2[%c1_7, %c0_8, %c0_9, %c0_10] : memref<2x3x1x256xf32, #tpu.memory_space<vmem>>, vector<1x1x1x256xf32>
    %9 = vector.shape_cast %8 : vector<1x1x1x256xf32> to vector<1x256xf32>
    %10 = arith.subf %9, %7 : vector<1x256xf32>
    %11 = arith.mulf %1, %10 : vector<1x256xf32>
    %12 = arith.addf %7, %11 : vector<1x256xf32>
    %c0_11 = arith.constant 0 : index
    %c0_12 = arith.constant 0 : index
    %c0_13 = arith.constant 0 : index
    %c0_14 = arith.constant 0 : index
    %13 = vector.load %arg4[%c0_11, %c0_12, %c0_13, %c0_14] : memref<2x3x1x256xf32, #tpu.memory_space<vmem>>, vector<1x1x1x256xf32>
    %14 = vector.shape_cast %13 : vector<1x1x1x256xf32> to vector<1x256xf32>
    %15 = vector.shape_cast %12 : vector<1x256xf32> to vector<1x1x1x256xf32>
    tpu.vector_store %arg4[%c0_11, %c0_12, %c0_13, %c0_14], %15 {strides = array<i32>} : memref<2x3x1x256xf32, #tpu.memory_space<vmem>>, vector<1x1x1x256xf32>,
    %c0_15 = arith.constant 0 : index
    %c1_16 = arith.constant 1 : index
    %c0_17 = arith.constant 0 : index
    %c0_18 = arith.constant 0 : index
    %16 = vector.load %arg1[%c0_15, %c1_16, %c0_17, %c0_18] : memref<2x3x1x256xf32, #tpu.memory_space<vmem>>, vector<1x1x1x256xf32>
    %17 = vector.shape_cast %16 : vector<1x1x1x256xf32> to vector<1x256xf32>
    %cst_19 = arith.constant 4.46428585 : f32
    %18 = vector.broadcast %cst_19 : f32 to vector<1x256xf32>
    %19 = arith.mulf %17, %18 : vector<1x256xf32>
    %cst_20 = arith.constant -2.03571439 : f32
    %20 = vector.broadcast %cst_20 : f32 to vector<1x256xf32>
    %21 = arith.addf %19, %20 : vector<1x256xf32>
    %c1_21 = arith.constant 1 : index
    %c1_22 = arith.constant 1 : index
    %c0_23 = arith.constant 0 : index
    %c0_24 = arith.constant 0 : index
    %22 = vector.load %arg2[%c1_21, %c1_22, %c0_23, %c0_24] : memref<2x3x1x256xf32, #tpu.memory_space<vmem>>, vector<1x1x1x256xf32>
    %23 = vector.shape_cast %22 : vector<1x1x1x256xf32> to vector<1x256xf32>
    %24 = arith.subf %23, %21 : vector<1x256xf32>
    %25 = arith.mulf %1, %24 : vector<1x256xf32>
    %26 = arith.addf %21, %25 : vector<1x256xf32>
    %c0_25 = arith.constant 0 : index
    %c1_26 = arith.constant 1 : index
    %c0_27 = arith.constant 0 : index
    %c0_28 = arith.constant 0 : index
    %27 = vector.load %arg4[%c0_25, %c1_26, %c0_27, %c0_28] : memref<2x3x1x256xf32, #tpu.memory_space<vmem>>, vector<1x1x1x256xf32>
    %28 = vector.shape_cast %27 : vector<1x1x1x256xf32> to vector<1x256xf32>
    %29 = vector.shape_cast %26 : vector<1x256xf32> to vector<1x1x1x256xf32>
    tpu.vector_store %arg4[%c0_25, %c1_26, %c0_27, %c0_28], %29 {strides = array<i32>} : memref<2x3x1x256xf32, #tpu.memory_space<vmem>>, vector<1x1x1x256xf32>,
    %c0_29 = arith.constant 0 : index
    %c2 = arith.constant 2 : index
    %c0_30 = arith.constant 0 : index
    %c0_31 = arith.constant 0 : index
    %30 = vector.load %arg1[%c0_29, %c2, %c0_30, %c0_31] : memref<2x3x1x256xf32, #tpu.memory_space<vmem>>, vector<1x1x1x256xf32>
    %31 = vector.shape_cast %30 : vector<1x1x1x256xf32> to vector<1x256xf32>
    %cst_32 = arith.constant 4.44444466 : f32
    %32 = vector.broadcast %cst_32 : f32 to vector<1x256xf32>
    %33 = arith.mulf %31, %32 : vector<1x256xf32>
    %cst_33 = arith.constant -1.80444443 : f32
    %34 = vector.broadcast %cst_33 : f32 to vector<1x256xf32>
    %35 = arith.addf %33, %34 : vector<1x256xf32>
    %c1_34 = arith.constant 1 : index
    %c2_35 = arith.constant 2 : index
    %c0_36 = arith.constant 0 : index
    %c0_37 = arith.constant 0 : index
    %36 = vector.load %arg2[%c1_34, %c2_35, %c0_36, %c0_37] : memref<2x3x1x256xf32, #tpu.memory_space<vmem>>, vector<1x1x1x256xf32>
    %37 = vector.shape_cast %36 : vector<1x1x1x256xf32> to vector<1x256xf32>
    %38 = arith.subf %37, %35 : vector<1x256xf32>
    %39 = arith.mulf %1, %38 : vector<1x256xf32>
    %40 = arith.addf %35, %39 : vector<1x256xf32>
    %c0_38 = arith.constant 0 : index
    %c2_39 = arith.constant 2 : index
    %c0_40 = arith.constant 0 : index
    %c0_41 = arith.constant 0 : index
    %41 = vector.load %arg4[%c0_38, %c2_39, %c0_40, %c0_41] : memref<2x3x1x256xf32, #tpu.memory_space<vmem>>, vector<1x1x1x256xf32>
    %42 = vector.shape_cast %41 : vector<1x1x1x256xf32> to vector<1x256xf32>
    %43 = vector.shape_cast %40 : vector<1x256xf32> to vector<1x1x1x256xf32>
    tpu.vector_store %arg4[%c0_38, %c2_39, %c0_40, %c0_41], %43 {strides = array<i32>} : memref<2x3x1x256xf32, #tpu.memory_space<vmem>>, vector<1x1x1x256xf32>,
    %c0_42 = arith.constant 0 : index
    %c0_43 = arith.constant 0 : index
    %c0_44 = arith.constant 0 : index
    %c0_45 = arith.constant 0 : index
    %44 = vector.load %arg3[%c0_42, %c0_43, %c0_44, %c0_45] : memref<2x1x1x256xf32, #tpu.memory_space<vmem>>, vector<1x1x1x256xf32>
    %45 = vector.shape_cast %44 : vector<1x1x1x256xf32> to vector<1x256xf32>
    %c1_46 = arith.constant 1 : index
    %c0_47 = arith.constant 0 : index
    %c0_48 = arith.constant 0 : index
    %c0_49 = arith.constant 0 : index
    %46 = vector.load %arg1[%c1_46, %c0_47, %c0_48, %c0_49] : memref<2x3x1x256xf32, #tpu.memory_space<vmem>>, vector<1x1x1x256xf32>
    %47 = vector.shape_cast %46 : vector<1x1x1x256xf32> to vector<1x256xf32>
    %cst_50 = arith.constant 4.36681223 : f32
    %48 = vector.broadcast %cst_50 : f32 to vector<1x256xf32>
    %49 = arith.mulf %47, %48 : vector<1x256xf32>
    %cst_51 = arith.constant -2.11790395 : f32
    %50 = vector.broadcast %cst_51 : f32 to vector<1x256xf32>
    %51 = arith.addf %49, %50 : vector<1x256xf32>
    %c0_52 = arith.constant 0 : index
    %c0_53 = arith.constant 0 : index
    %c0_54 = arith.constant 0 : index
    %c0_55 = arith.constant 0 : index
    %52 = vector.load %arg2[%c0_52, %c0_53, %c0_54, %c0_55] : memref<2x3x1x256xf32, #tpu.memory_space<vmem>>, vector<1x1x1x256xf32>
    %53 = vector.shape_cast %52 : vector<1x1x1x256xf32> to vector<1x256xf32>
    %54 = arith.subf %53, %51 : vector<1x256xf32>
    %55 = arith.mulf %45, %54 : vector<1x256xf32>
    %56 = arith.addf %51, %55 : vector<1x256xf32>
    %c1_56 = arith.constant 1 : index
    %c0_57 = arith.constant 0 : index
    %c0_58 = arith.constant 0 : index
    %c0_59 = arith.constant 0 : index
    %57 = vector.load %arg4[%c1_56, %c0_57, %c0_58, %c0_59] : memref<2x3x1x256xf32, #tpu.memory_space<vmem>>, vector<1x1x1x256xf32>
    %58 = vector.shape_cast %57 : vector<1x1x1x256xf32> to vector<1x256xf32>
    %59 = vector.shape_cast %56 : vector<1x256xf32> to vector<1x1x1x256xf32>
    tpu.vector_store %arg4[%c1_56, %c0_57, %c0_58, %c0_59], %59 {strides = array<i32>} : memref<2x3x1x256xf32, #tpu.memory_space<vmem>>, vector<1x1x1x256xf32>,
    %c1_60 = arith.constant 1 : index
    %c1_61 = arith.constant 1 : index
    %c0_62 = arith.constant 0 : index
    %c0_63 = arith.constant 0 : index
    %60 = vector.load %arg1[%c1_60, %c1_61, %c0_62, %c0_63] : memref<2x3x1x256xf32, #tpu.memory_space<vmem>>, vector<1x1x1x256xf32>
    %61 = vector.shape_cast %60 : vector<1x1x1x256xf32> to vector<1x256xf32>
    %cst_64 = arith.constant 4.46428585 : f32
    %62 = vector.broadcast %cst_64 : f32 to vector<1x256xf32>
    %63 = arith.mulf %61, %62 : vector<1x256xf32>
    %cst_65 = arith.constant -2.03571439 : f32
    %64 = vector.broadcast %cst_65 : f32 to vector<1x256xf32>
    %65 = arith.addf %63, %64 : vector<1x256xf32>
    %c0_66 = arith.constant 0 : index
    %c1_67 = arith.constant 1 : index
    %c0_68 = arith.constant 0 : index
    %c0_69 = arith.constant 0 : index
    %66 = vector.load %arg2[%c0_66, %c1_67, %c0_68, %c0_69] : memref<2x3x1x256xf32, #tpu.memory_space<vmem>>, vector<1x1x1x256xf32>
    %67 = vector.shape_cast %66 : vector<1x1x1x256xf32> to vector<1x256xf32>
    %68 = arith.subf %67, %65 : vector<1x256xf32>
    %69 = arith.mulf %45, %68 : vector<1x256xf32>
    %70 = arith.addf %65, %69 : vector<1x256xf32>
    %c1_70 = arith.constant 1 : index
    %c1_71 = arith.constant 1 : index
    %c0_72 = arith.constant 0 : index
    %c0_73 = arith.constant 0 : index
    %71 = vector.load %arg4[%c1_70, %c1_71, %c0_72, %c0_73] : memref<2x3x1x256xf32, #tpu.memory_space<vmem>>, vector<1x1x1x256xf32>
    %72 = vector.shape_cast %71 : vector<1x1x1x256xf32> to vector<1x256xf32>
    %73 = vector.shape_cast %70 : vector<1x256xf32> to vector<1x1x1x256xf32>
    tpu.vector_store %arg4[%c1_70, %c1_71, %c0_72, %c0_73], %73 {strides = array<i32>} : memref<2x3x1x256xf32, #tpu.memory_space<vmem>>, vector<1x1x1x256xf32>,
    %c1_74 = arith.constant 1 : index
    %c2_75 = arith.constant 2 : index
    %c0_76 = arith.constant 0 : index
    %c0_77 = arith.constant 0 : index
    %74 = vector.load %arg1[%c1_74, %c2_75, %c0_76, %c0_77] : memref<2x3x1x256xf32, #tpu.memory_space<vmem>>, vector<1x1x1x256xf32>
    %75 = vector.shape_cast %74 : vector<1x1x1x256xf32> to vector<1x256xf32>
    %cst_78 = arith.constant 4.44444466 : f32
    %76 = vector.broadcast %cst_78 : f32 to vector<1x256xf32>
    %77 = arith.mulf %75, %76 : vector<1x256xf32>
    %cst_79 = arith.constant -1.80444443 : f32
    %78 = vector.broadcast %cst_79 : f32 to vector<1x256xf32>
    %79 = arith.addf %77, %78 : vector<1x256xf32>
    %c0_80 = arith.constant 0 : index
    %c2_81 = arith.constant 2 : index
    %c0_82 = arith.constant 0 : index
    %c0_83 = arith.constant 0 : index
    %80 = vector.load %arg2[%c0_80, %c2_81, %c0_82, %c0_83] : memref<2x3x1x256xf32, #tpu.memory_space<vmem>>, vector<1x1x1x256xf32>
    %81 = vector.shape_cast %80 : vector<1x1x1x256xf32> to vector<1x256xf32>
    %82 = arith.subf %81, %79 : vector<1x256xf32>
    %83 = arith.mulf %45, %82 : vector<1x256xf32>
    %84 = arith.addf %79, %83 : vector<1x256xf32>
    %c1_84 = arith.constant 1 : index
    %c2_85 = arith.constant 2 : index
    %c0_86 = arith.constant 0 : index
    %c0_87 = arith.constant 0 : index
    %85 = vector.load %arg4[%c1_84, %c2_85, %c0_86, %c0_87] : memref<2x3x1x256xf32, #tpu.memory_space<vmem>>, vector<1x1x1x256xf32>
    %86 = vector.shape_cast %85 : vector<1x1x1x256xf32> to vector<1x256xf32>
    %87 = vector.shape_cast %84 : vector<1x256xf32> to vector<1x1x1x256xf32>
    tpu.vector_store %arg4[%c1_84, %c2_85, %c0_86, %c0_87], %87 {strides = array<i32>} : memref<2x3x1x256xf32, #tpu.memory_space<vmem>>, vector<1x1x1x256xf32>,
    return
  }
  func.func @transform_0(%arg0: i32) -> (i32, i32, i32, i32) {
    %c0_i32 = arith.constant 0 : i32
    %c0_i32_0 = arith.constant 0 : i32
    %c0_i32_1 = arith.constant 0 : i32
    %c0_i32_2 = arith.constant 0 : i32
    return %arg0, %c0_i32, %c0_i32_0, %c0_i32_1 : i32, i32, i32, i32
  }
  func.func @transform_1(%arg0: i32) -> (i32, i32, i32, i32) {
    %c0_i32 = arith.constant 0 : i32
    %0 = arith.subi %c0_i32, %arg0 : i32
    %c0_i32_0 = arith.constant 0 : i32
    %c0_i32_1 = arith.constant 0 : i32
    %c0_i32_2 = arith.constant 0 : i32
    %c0_i32_3 = arith.constant 0 : i32
    return %0, %c0_i32_0, %c0_i32_1, %c0_i32_2 : i32, i32, i32, i32
  }
  func.func @transform_2(%arg0: i32) -> (i32, i32, i32, i32) {
    %c0_i32 = arith.constant 0 : i32
    %0 = arith.subi %c0_i32, %arg0 : i32
    %c0_i32_0 = arith.constant 0 : i32
    %c0_i32_1 = arith.constant 0 : i32
    %c0_i32_2 = arith.constant 0 : i32
    %c0_i32_3 = arith.constant 0 : i32
    return %0, %c0_i32_0, %c0_i32_1, %c0_i32_2 : i32, i32, i32, i32
  }
  func.func @transform_3(%arg0: i32) -> (i32, i32, i32, i32) {
    %c0_i32 = arith.constant 0 : i32
    %c0_i32_0 = arith.constant 0 : i32
    %c0_i32_1 = arith.constant 0 : i32
    %c0_i32_2 = arith.constant 0 : i32
    return %arg0, %c0_i32, %c0_i32_0, %c0_i32_1 : i32, i32, i32, i32
  }
}

</mosaic_0001>

<llo_original>
// kernel: tpu_custom_call.1
$region0: #{tpu_custom_call.1}
  #allocation0 [shape = 'u32[]', space=smem, size = 0x4, offset = 0x4, fixed_abs, tag = 'smem constant byte address 0x4 - core index']
  #allocation1 [shape = 'u32[144,128]{1,0:T(1,128)}', space=vmem, size = 0x12000, scoped, tag = 'internal scratch']
  %s0 = inlined_call_operand.hbm [shape: f32[2,3,1,256], index: 0, kind: input, shape index: {}]
  %s1 = inlined_call_operand.hbm [shape: f32[2,3,1,256], index: 1, kind: input, shape index: {}]
  %s2 = inlined_call_operand.vmem [shape: f32[2,1,1,256], index: 2, kind: input, shape index: {}]
  %s3 = inlined_call_operand.hbm [shape: f32[2,3,1,256], index: 3, kind: output, shape index: {}]
  %s4 = sld [smem:[#allocation0]]
  $region30: #{tpu_custom_call.1} parent=0
    _
  %s6 = ssub.s32 1, %s4
  %s7 = scalar_select 0, %s6, %s4
  $region1: #{tpu_custom_call.1} parent=0
    #allocation2 [shape = 'u8[6144]{0}', space=vmem, size = 0x1800, scoped, tag = 'input window, operand 0, single buffered']
    #allocation3 [shape = 's32[1]{0}', space=sflag, size = 0x4, scoped, tag = 'scoped memory for tpu_custom_call.1']
    #allocation4 [shape = 's32[1]{0}', space=sflag, size = 0x4, scoped, tag = 'scoped memory for tpu_custom_call.1']
    #allocation5 [shape = 'u8[6144]{0}', space=vmem, size = 0x1800, scoped, tag = 'input window, operand 1, single buffered']
    #allocation6 [shape = 's32[1]{0}', space=sflag, size = 0x4, scoped, tag = 'scoped memory for tpu_custom_call.1']
    #allocation7 [shape = 'u8[6144]{0}', space=vmem, size = 0x1800, scoped, tag = 'output window, operand 0, single buffered']
    %8 = vsyncpa [#allocation3], 0
    %9 = vsyncpa [#allocation6], 0
    %10 = vsyncpa [#allocation4], 0
    // Predicated region
    $region2: #{tpu_custom_call.1} parent=1 // pred_check
      _
    $region3: #{tpu_custom_call.1} parent=1 // pred_check_branch
      %12 = sbr.rel (0) target = $region5
    $region4: #{tpu_custom_call.1} parent=1 // pred_region
      %s14 = ssub.s32 192, 192
      %15 = vsyncadd [#allocation3], %s14
      %s16 = sshll.u32 [#allocation2], 4
      %s17 = int_to_ptr.vmem [resolvable:$true] %s16
      %22 = dma.hbm_to_vmem [thread:$0]  %s0, 192, %s17, [#allocation3], 32, 32, 2
    $region5: #{tpu_custom_call.1} parent=1 // pred_fallthru
      _
    // Predicated region
    $region6: #{tpu_custom_call.1} parent=1 // pred_check
      _
    $region7: #{tpu_custom_call.1} parent=1 // pred_check_branch
      %24 = sbr.rel (0) target = $region9
    $region8: #{tpu_custom_call.1} parent=1 // pred_region
      %s25 = ssub.s32 0, 0
      %s26 = smul.u32 2, %s25
      %s28 = ssub.s32 192, 192
      %29 = vsyncadd [#allocation6], %s28
      %s30 = smul.addr %s26, 6
      %s31 = smul.addr %s30, 16
      %s32 = scalar_lea.hbm %s1, %s31
      %s33 = sshll.u32 [#allocation5], 4
      %s34 = int_to_ptr.vmem [resolvable:$true] %s33
      %39 = dma.hbm_to_vmem [thread:$0]  %s32, 192, %s34, [#allocation6], 32, 32, 2
    $region9: #{tpu_custom_call.1} parent=1 // pred_fallthru
      _
    // Predicated region
    $region10: #{tpu_custom_call.1} parent=1 // pred_check
      _
    $region11: #{tpu_custom_call.1} parent=1 // pred_check_branch
      %41 = sbr.rel (0) target = $region13
    $region12: #{tpu_custom_call.1} parent=1 // pred_region
      %s42 = ssub.s32 0, 0
      %s43 = smul.u32 2, %s42
      %p44 = scmp.lt.s32.totalorder %s43, 1
      %s45 = scalar_select %p44, %s43, 1
      %s46 = smul.addr %s45, 2
      %s47 = scalar_lea.vmem %s2, %s46
      %s48 = ssub.s32 0, 0
      %s49 = smul.u32 2, %s48
    $region13: #{tpu_custom_call.1} parent=1 // pred_fallthru
      _
    // Predicated region
    $region14: #{tpu_custom_call.1} parent=1 // pred_check
      _
    $region15: #{tpu_custom_call.1} parent=1 // pred_check_branch
      %51 = sbr.rel (0) target = $region17
    $region16: #{tpu_custom_call.1} parent=1 // pred_region
      %52 = dma.done [#allocation3], 192
    $region17: #{tpu_custom_call.1} parent=1 // pred_fallthru
      _
    // Predicated region
    $region18: #{tpu_custom_call.1} parent=1 // pred_check
      _
    $region19: #{tpu_custom_call.1} parent=1 // pred_check_branch
      %54 = sbr.rel (0) target = $region21
    $region20: #{tpu_custom_call.1} parent=1 // pred_region
      %55 = dma.done [#allocation6], 192
    $region21: #{tpu_custom_call.1} parent=1 // pred_fallthru
      _
    %s56 = ssub.s32 0, 0
    %s57 = smul.u32 2, %s56
    %p58 = scmp.lt.s32.totalorder %s57, 1
    %s59 = scalar_select %p58, %s57, 1
    %s60 = smul.addr %s59, 2
    %s61 = scalar_lea.vmem %s2, %s60
    %s62 = ssub.s32 0, 0
    %s63 = smul.u32 2, %s62
    %s64 = ssub.s32 0, 0
    %s65 = smul.u32 2, %s64
    %p66 = scmp.lt.s32.totalorder %s65, 1
    %s67 = scalar_select %p66, %s65, 1
    %s68 = smul.addr %s67, 2
    %s69 = scalar_lea.vmem %s2, %s68
    %s70 = ssub.s32 0, 0
    %s71 = smul.u32 2, %s70
    %s72 = scalar_lea.vmem %s69, 2
    %v73 = vld [vmem:[%s72] sm:$0x3]
    %v74 = vld [vmem:[#allocation2] sm:$0x3]
    %v75 = vmul.f32 %v74, 4.366812
    %v76 = vadd.f32 %v75, -2.117904
    %s77 = scalar_lea.vmem [#allocation5], 6
    %v78 = vld [vmem:[%s77] sm:$0x3]
    %v79 = vsub.f32 %v78, %v76
    %v80 = vmul.f32 %v73, %v79
    %v81 = vadd.f32 %v76, %v80
    %v82 = vlaneseq
    %vm83 = vcmp.ge.s32.totalorder %v82, 0
    %vm84 = vcmp.lt.s32.totalorder %v82, 256
    %vm85 = vmand %vm83, %vm84
    %86 = vst.msk [vmem:[#allocation7] sm:$0x3] %vm85, %v81
    %s87 = scalar_lea.vmem [#allocation2], 2
    %v88 = vld [vmem:[%s87] sm:$0x3]
    %v89 = vmul.f32 %v88, 4.464286
    %v90 = vadd.f32 %v89, -2.0357144
    %s91 = scalar_lea.vmem [#allocation5], 8
    %v92 = vld [vmem:[%s91] sm:$0x3]
    %v93 = vsub.f32 %v92, %v90
    %v94 = vmul.f32 %v73, %v93
    %v95 = vadd.f32 %v90, %v94
    %s96 = scalar_lea.vmem [#allocation7], 2
    %97 = vst.msk [vmem:[%s96] sm:$0x3] %vm85, %v95
    %s98 = scalar_lea.vmem [#allocation2], 4
    %v99 = vld [vmem:[%s98] sm:$0x3]
    %v100 = vmul.f32 %v99, 4.4444447
    %v101 = vadd.f32 %v100, -1.8044444
    %s102 = scalar_lea.vmem [#allocation5], 10
    %v103 = vld [vmem:[%s102] sm:$0x3]
    %v104 = vsub.f32 %v103, %v101
    %v105 = vmul.f32 %v73, %v104
    %v106 = vadd.f32 %v101, %v105
    %s107 = scalar_lea.vmem [#allocation7], 4
    %108 = vst.msk [vmem:[%s107] sm:$0x3] %vm85, %v106
    %v109 = vld [vmem:[%s69] sm:$0x3]
    %s110 = scalar_lea.vmem [#allocation2], 6
    %v111 = vld [vmem:[%s110] sm:$0x3]
    %v112 = vmul.f32 %v111, 4.366812
    %v113 = vadd.f32 %v112, -2.117904
    %v114 = vld [vmem:[#allocation5] sm:$0x3]
    %v115 = vsub.f32 %v114, %v113
    %v116 = vmul.f32 %v109, %v115
    %v117 = vadd.f32 %v113, %v116
    %s118 = scalar_lea.vmem [#allocation7], 6
    %119 = vst.msk [vmem:[%s118] sm:$0x3] %vm85, %v117
    %s120 = scalar_lea.vmem [#allocation2], 8
    %v121 = vld [vmem:[%s120] sm:$0x3]
    %v122 = vmul.f32 %v121, 4.464286
    %v123 = vadd.f32 %v122, -2.0357144
    %s124 = scalar_lea.vmem [#allocation5], 2
    %v125 = vld [vmem:[%s124] sm:$0x3]
    %v126 = vsub.f32 %v125, %v123
    %v127 = vmul.f32 %v109, %v126
    %v128 = vadd.f32 %v123, %v127
    %s129 = scalar_lea.vmem [#allocation7], 8
    %130 = vst.msk [vmem:[%s129] sm:$0x3] %vm85, %v128
    %s131 = scalar_lea.vmem [#allocation2], 10
    %v132 = vld [vmem:[%s131] sm:$0x3]
    %v133 = vmul.f32 %v132, 4.4444447
    %v134 = vadd.f32 %v133, -1.8044444
    %s135 = scalar_lea.vmem [#allocation5], 4
    %v136 = vld [vmem:[%s135] sm:$0x3]
    %v137 = vsub.f32 %v136, %v134
    %v138 = vmul.f32 %v109, %v137
    %v139 = vadd.f32 %v134, %v138
    %s140 = scalar_lea.vmem [#allocation7], 10
    %141 = vst.msk [vmem:[%s140] sm:$0x3] %vm85, %v139
    // Predicated region
    $region22: #{tpu_custom_call.1} parent=1 // pred_check
      _
    $region23: #{tpu_custom_call.1} parent=1 // pred_check_branch
      %143 = sbr.rel (0) target = $region25
    $region24: #{tpu_custom_call.1} parent=1 // pred_region
      %s145 = ssub.s32 192, 192
      %146 = vsyncadd [#allocation4], %s145
      %s147 = sshll.u32 [#allocation7], 4
      %s148 = int_to_ptr.vmem [resolvable:$true] %s147
      %153 = dma.vmem_to_hbm [thread:$0]  %s148, 192, %s3, [#allocation4], 32, 32, 2
    $region25: #{tpu_custom_call.1} parent=1 // pred_fallthru
      _
    // Predicated region
    $region26: #{tpu_custom_call.1} parent=1 // pred_check
      _
    $region27: #{tpu_custom_call.1} parent=1 // pred_check_branch
      %155 = sbr.rel (0) target = $region29
    $region28: #{tpu_custom_call.1} parent=1 // pred_region
      %156 = dma.done [#allocation4], 192
    $region29: #{tpu_custom_call.1} parent=1 // pred_fallthru
      _
    %157 = vsyncpa [#allocation3], 1
    %158 = vsyncpa [#allocation6], 1
    %159 = vsyncpa [#allocation4], 1

</llo_original>
